<compile_context>
chip_gen: v7x
topology: tpu7x:2x2x1
jax: 0.10.0
libtpu: 0.0.40
codegen_flags: <defaults>
</compile_context>

<pallas_src>
import functools

import jax
import jax.numpy as jnp
from jax.experimental import pallas as pl
from jax.experimental.pallas import tpu as pltpu


def _focal_loss_kernel(logits_ref, targets_ref, wa_ref, out_ref, *, gamma, n_valid, tile_n):
    x = logits_ref[...].astype(jnp.float32)          # (TN, C), upcast on the VPU
    t = targets_ref[...]                             # (TN, 1) int32
    tn, c = x.shape

    # Numerically stable log-sum-exp.
    m = jnp.max(x, axis=-1, keepdims=True)                               # (TN, 1)
    lse = jnp.log(jnp.sum(jnp.exp(x - m), axis=-1, keepdims=True)) + m   # (TN, 1)

    # One-hot gather of the target class (no dynamic gather on TPU).
    class_ids = jax.lax.broadcasted_iota(jnp.int32, (tn, c), 1)          # (TN, C)
    onehot = (class_ids == t).astype(jnp.float32)                        # (TN, C)

    x_t = jnp.sum(onehot * x, axis=-1, keepdims=True)                    # logits[t]
    w_t = jnp.sum(onehot * wa_ref[...], axis=-1, keepdims=True)          # (cw*alpha)[t]

    ce = w_t * (lse - x_t)                                               # weighted NLL
    pt = jnp.exp(-ce)
    d = 1.0 - pt

    # Integer gamma -> repeated VPU multiplies (keeps the single EUP slot free).
    g = float(gamma)
    if g == int(g) and 0 <= int(g) <= 8:
        gi = int(g)
        if gi == 0:
            mod = jnp.ones_like(d)
        else:
            mod = d
            for _ in range(gi - 1):
                mod = mod * d
    else:
        mod = jnp.maximum(d, 0.0) ** jnp.float32(g)
    focal = mod * ce                                                     # (TN, 1)

    # Mask padded rows (N was padded up to a multiple of tile_n on the host).
    row_ids = jax.lax.broadcasted_iota(jnp.int32, (tn, 1), 0) + pl.program_id(0) * tile_n
    focal = jnp.where(row_ids < n_valid, focal, 0.0)

    # Lane-dense per-tile partial sum; tiny final reduction happens in plain JAX,
    # which keeps the grid axis "parallel" (megacore-friendly on v7x).
    out_ref[...] = jnp.full((8, 128), jnp.sum(focal), dtype=jnp.float32)


def _choose_tile_n(n, c, itemsize):
    # ~8 MiB per logits buffer -> ~16 MiB double-buffered; safe on v5e/v6e/v7x.
    budget = 8 * 1024 * 1024
    tn = budget // max(1, c * itemsize)
    tn = max(8, min(512, (tn // 8) * 8))
    n_pad8 = ((n + 7) // 8) * 8
    return min(tn, n_pad8)


@functools.partial(jax.jit, static_argnames=("gamma", "reduction"))
def weighted_focal_loss(logits, targets, class_weights=None, alpha=None,
                        gamma=2.0, reduction="mean"):
    n, c = logits.shape
    itemsize = jnp.dtype(logits.dtype).itemsize

    # Fold alpha into class_weights: one (1, C) row, one in-kernel gather.
    cw = (jnp.ones((c,), jnp.float32) if class_weights is None
          else class_weights.astype(jnp.float32))
    if alpha is not None:
        cw = cw * alpha.astype(jnp.float32)
    wa = cw.reshape(1, c)

    tile_n = _choose_tile_n(n, c, itemsize)
    num_tiles = -(-n // tile_n)
    n_pad = num_tiles * tile_n

    logits_p = logits if n_pad == n else jnp.pad(logits, ((0, n_pad - n), (0, 0)))
    targets_p = targets.astype(jnp.int32).reshape(n, 1)
    if n_pad > n:
        targets_p = jnp.pad(targets_p, ((0, n_pad - n), (0, 0)))

    kernel = functools.partial(_focal_loss_kernel, gamma=gamma, n_valid=n, tile_n=tile_n)

    vmem_bytes = (2 * tile_n * c * itemsize   # double-buffered logits tiles
                  + 2 * tile_n * 4            # targets tiles
                  + 2 * c * 4                 # folded class-weight row
                  + 2 * 8 * 128 * 4)          # output blocks
    vmem_limit = int(min(max(vmem_bytes + (8 << 20), 16 << 20), 48 << 20))

    partials = pl.pallas_call(
        kernel,
        out_shape=jax.ShapeDtypeStruct((num_tiles * 8, 128), jnp.float32),
        grid=(num_tiles,),
        in_specs=[
            pl.BlockSpec((tile_n, c), lambda i: (i, 0)),   # logits tile (native dtype)
            pl.BlockSpec((tile_n, 1), lambda i: (i, 0)),   # targets tile
            pl.BlockSpec((1, c), lambda i: (0, 0)),        # folded weights row
        ],
        out_specs=pl.BlockSpec((8, 128), lambda i: (i, 0)),
        compiler_params=pltpu.CompilerParams(
            dimension_semantics=("parallel",),
            vmem_limit_bytes=vmem_limit,
        ),
        cost_estimate=pl.CostEstimate(
            flops=8 * n * c,
            transcendentals=n * c + 3 * n,
            bytes_accessed=n * c * itemsize + n * 4 + c * 4 + num_tiles * 8 * 128 * 4,
        ),
    )(logits_p, targets_p, wa)

    per_tile = partials[::8, 0]                 # one partial sum per grid step
    total = jnp.sum(per_tile)
    if reduction == "mean":
        return total / jnp.float32(n)
    elif reduction == "sum":
        return total
    else:
        # TODO(synk): reduction='none' (per-sample focal vector) would need a per-row
        # output stream; not emitted by this partial-sum kernel.
        raise NotImplementedError("reduction='none' not supported by this kernel")


def _reference(logits, targets, class_weights, alpha, gamma=2.0):
    logp = jax.nn.log_softmax(logits.astype(jnp.float32), axis=-1)
    nll = -jnp.take_along_axis(logp, targets[:, None], axis=-1)[:, 0]
    ce = class_weights[targets] * nll
    ce = alpha[targets] * ce
    pt = jnp.exp(-ce)
    return jnp.mean((1.0 - pt) ** gamma * ce)


if __name__ == "__main__":
    key = jax.random.PRNGKey(0)
    k1, k2 = jax.random.split(key)

    N, C = 8, 16  # batch=8, classes=16
    logits = jax.random.normal(k1, (N, C), dtype=jnp.float32)
    targets = jax.random.randint(k2, (N,), 0, C, dtype=jnp.int32)

    gamma = 2.0
    class_weights = jnp.linspace(1.0, 2.0, C, dtype=jnp.float32)
    alpha = jnp.linspace(0.5, 1.5, C, dtype=jnp.float32)

    loss = weighted_focal_loss(logits, targets, class_weights, alpha, gamma=gamma)
    loss = jax.block_until_ready(loss)

    ref = _reference(logits, targets, class_weights, alpha, gamma=gamma)
    assert jnp.allclose(loss, ref, rtol=1e-5, atol=1e-5), (loss, ref)

    print("KERNEL_OK")
</pallas_src>

<mosaic_0001>
module attributes {stable_mosaic.version = 11 : i64} {
  func.func @_focal_loss_kernel(%arg0: i32, %arg1: memref<8x16xf32, #tpu.memory_space<vmem>>, %arg2: memref<8x1xi32, #tpu.memory_space<vmem>>, %arg3: memref<1x16xf32, #tpu.memory_space<vmem>>, %arg4: memref<8x128xf32, #tpu.memory_space<vmem>>) attributes {dimension_semantics = [#tpu.dimension_semantics<parallel>], iteration_bounds = array<i64: 1>, scalar_prefetch = 0 : i64, scratch_operands = 0 : i64, tpu.core_type = #tpu.core_type<tc>, window_params = [{transform_indices = @transform_0, window_bounds = array<i64: 8, 16>}, {transform_indices = @transform_1, window_bounds = array<i64: 8, 1>}, {pipeline_mode = #tpu.pipeline_mode<synchronous>, transform_indices = @transform_2, window_bounds = array<i64: 1, 16>}, {transform_indices = @transform_3, window_bounds = array<i64: 8, 128>}]} {
    %c0 = arith.constant 0 : index
    %c0_0 = arith.constant 0 : index
    %0 = vector.load %arg1[%c0, %c0_0] : memref<8x16xf32, #tpu.memory_space<vmem>>, vector<8x16xf32>
    %c0_1 = arith.constant 0 : index
    %c0_2 = arith.constant 0 : index
    %1 = vector.load %arg2[%c0_1, %c0_2] : memref<8x1xi32, #tpu.memory_space<vmem>>, vector<8x1xi32>
    %cst = arith.constant dense<0xFF800000> : vector<8xf32>
    %2 = vector.multi_reduction <maximumf>, %0, %cst [1] : vector<8x16xf32> to vector<8xf32>
    %3 = vector.shape_cast %2 : vector<8xf32> to vector<8x1xf32>
    %4 = vector.broadcast %3 : vector<8x1xf32> to vector<8x16xf32>
    %5 = arith.subf %0, %4 : vector<8x16xf32>
    %6 = math.exp %5 : vector<8x16xf32>
    %cst_3 = arith.constant dense<0.000000e+00> : vector<8xf32>
    %7 = vector.multi_reduction <add>, %6, %cst_3 [1] : vector<8x16xf32> to vector<8xf32>
    %8 = vector.shape_cast %7 : vector<8xf32> to vector<8x1xf32>
    %9 = math.log %8 : vector<8x1xf32>
    %10 = arith.addf %9, %3 : vector<8x1xf32>
    %11 = tpu.iota {dimensions = array<i32: 1>} : vector<8x16xi32>
    %12 = vector.broadcast %1 : vector<8x1xi32> to vector<8x16xi32>
    %13 = arith.cmpi eq, %11, %12 : vector<8x16xi32>
    %14 = arith.extui %13 : vector<8x16xi1> to vector<8x16xi32>
    %15 = arith.sitofp %14 : vector<8x16xi32> to vector<8x16xf32>
    %16 = arith.mulf %15, %0 : vector<8x16xf32>
    %cst_4 = arith.constant dense<0.000000e+00> : vector<8xf32>
    %17 = vector.multi_reduction <add>, %16, %cst_4 [1] : vector<8x16xf32> to vector<8xf32>
    %18 = vector.shape_cast %17 : vector<8xf32> to vector<8x1xf32>
    %c0_5 = arith.constant 0 : index
    %c0_6 = arith.constant 0 : index
    %19 = vector.load %arg3[%c0_5, %c0_6] : memref<1x16xf32, #tpu.memory_space<vmem>>, vector<1x16xf32>
    %20 = vector.broadcast %19 : vector<1x16xf32> to vector<8x16xf32>
    %21 = arith.mulf %15, %20 : vector<8x16xf32>
    %cst_7 = arith.constant dense<0.000000e+00> : vector<8xf32>
    %22 = vector.multi_reduction <add>, %21, %cst_7 [1] : vector<8x16xf32> to vector<8xf32>
    %23 = vector.shape_cast %22 : vector<8xf32> to vector<8x1xf32>
    %24 = arith.subf %10, %18 : vector<8x1xf32>
    %25 = arith.mulf %23, %24 : vector<8x1xf32>
    %cst_8 = arith.constant 0.000000e+00 : f32
    %26 = vector.broadcast %cst_8 : f32 to vector<8x1xf32>
    %27 = arith.subf %26, %25 : vector<8x1xf32>
    %28 = math.exp %27 : vector<8x1xf32>
    %cst_9 = arith.constant 1.000000e+00 : f32
    %29 = vector.broadcast %cst_9 : f32 to vector<8x1xf32>
    %30 = arith.subf %29, %28 : vector<8x1xf32>
    %31 = arith.mulf %30, %30 : vector<8x1xf32>
    %32 = arith.mulf %31, %25 : vector<8x1xf32>
    %33 = tpu.iota {dimensions = array<i32: 0>} : vector<8x1xi32>
    %c8_i32 = arith.constant 8 : i32
    %34 = arith.muli %arg0, %c8_i32 : i32
    %35 = vector.broadcast %34 : i32 to vector<8x1xi32>
    %36 = arith.addi %33, %35 : vector<8x1xi32>
    %c8_i32_10 = arith.constant 8 : i32
    %37 = vector.broadcast %c8_i32_10 : i32 to vector<8x1xi32>
    %38 = arith.cmpi slt, %36, %37 : vector<8x1xi32>
    %cst_11 = arith.constant 0.000000e+00 : f32
    %39 = vector.broadcast %cst_11 : f32 to vector<8x1xf32>
    %40 = arith.select %38, %32, %39 : vector<8x1xi1>, vector<8x1xf32>
    %41 = vector.shape_cast %40 : vector<8x1xf32> to vector<1x8x1xf32>
    %cst_12 = arith.constant dense<0.000000e+00> : vector<1xf32>
    %42 = vector.multi_reduction <add>, %41, %cst_12 [1, 2] : vector<1x8x1xf32> to vector<1xf32>
    %43 = vector.shape_cast %42 : vector<1xf32> to vector<1x1x1xf32>
    %44 = vector.extract %43[0, 0, 0] : f32 from vector<1x1x1xf32>
    %45 = vector.broadcast %44 : f32 to vector<8x128xf32>
    %c0_13 = arith.constant 0 : index
    %c0_14 = arith.constant 0 : index
    %46 = vector.load %arg4[%c0_13, %c0_14] : memref<8x128xf32, #tpu.memory_space<vmem>>, vector<8x128xf32>
    tpu.vector_store %arg4[%c0_13, %c0_14], %45 {strides = array<i32>} : memref<8x128xf32, #tpu.memory_space<vmem>>, vector<8x128xf32>,
    return
  }
  func.func @transform_0(%arg0: i32) -> (i32, i32) {
    %c0_i32 = arith.constant 0 : i32
    %c0_i32_0 = arith.constant 0 : i32
    return %arg0, %c0_i32 : i32, i32
  }
  func.func @transform_1(%arg0: i32) -> (i32, i32) {
    %c0_i32 = arith.constant 0 : i32
    %c0_i32_0 = arith.constant 0 : i32
    return %arg0, %c0_i32 : i32, i32
  }
  func.func @transform_2(%arg0: i32) -> (i32, i32) {
    %c0_i32 = arith.constant 0 : i32
    %c0_i32_0 = arith.constant 0 : i32
    %c0_i32_1 = arith.constant 0 : i32
    return %c0_i32, %c0_i32_0 : i32, i32
  }
  func.func @transform_3(%arg0: i32) -> (i32, i32) {
    %c0_i32 = arith.constant 0 : i32
    %c0_i32_0 = arith.constant 0 : i32
    return %arg0, %c0_i32 : i32, i32
  }
}

</mosaic_0001>

<llo_original>
// kernel: weighted_focal_loss.1
$region0: #{weighted_focal_loss.1}
  #allocation0 [shape = 'u32[]', space=smem, size = 0x4, offset = 0x4, fixed_abs, tag = 'smem constant byte address 0x4 - core index']
  #allocation1 [shape = 'u32[144,128]{1,0:T(1,128)}', space=vmem, size = 0x12000, scoped, tag = 'internal scratch']
  %s0 = inlined_call_operand.vmem [shape: f32[8,16], index: 0, kind: input, shape index: {}]
  %s1 = inlined_call_operand.vmem [shape: s32[8,1], index: 1, kind: input, shape index: {}]
  %s2 = inlined_call_operand.vmem [shape: f32[1,16], index: 2, kind: input, shape index: {}]
  %s3 = inlined_call_operand.vmem [shape: f32[8,128], index: 3, kind: output, shape index: {}]
  %s4 = sld [smem:[#allocation0]]
  $region22: #{weighted_focal_loss.1} parent=0
    _
  %s6 = ssub.s32 1, %s4
  %s7 = scalar_select 0, %s6, %s4
  // Predicated region
  $region2: #{weighted_focal_loss.1} parent=0 // pred_check
    _
  $region3: #{weighted_focal_loss.1} parent=0 // pred_check_branch
    %9 = sbr.rel (0) target = $region5
  $region4: #{weighted_focal_loss.1} parent=0 // pred_region
    _
  $region5: #{weighted_focal_loss.1} parent=0 // pred_fallthru
    _
  // Predicated region
  $region6: #{weighted_focal_loss.1} parent=0 // pred_check
    _
  $region7: #{weighted_focal_loss.1} parent=0 // pred_check_branch
    %11 = sbr.rel (0) target = $region9
  $region8: #{weighted_focal_loss.1} parent=0 // pred_region
    _
  $region9: #{weighted_focal_loss.1} parent=0 // pred_fallthru
    _
  // Predicated region
  $region10: #{weighted_focal_loss.1} parent=0 // pred_check
    _
  $region11: #{weighted_focal_loss.1} parent=0 // pred_check_branch
    %13 = sbr.rel (0) target = $region13
  $region12: #{weighted_focal_loss.1} parent=0 // pred_region
    _
  $region13: #{weighted_focal_loss.1} parent=0 // pred_fallthru
    _
  %v14 = vld [vmem:[%s0] sm:$0xff]
  %v15 = vld [vmem:[%s1] sm:$0xff]
  %vm16 = vcmask 130048
  %v17 = vsel %vm16, %v14, -inf
  %18 = vmax.xlane.f32.xlu0 %v17
  %v19 = vpop.xlane.xlu0 %18
  %v20 = vsub.f32 %v14, %v19
  %v21 = vmul.f32 %v20, 1.442695
  %v22 = vpow.pop %v21
  %v23 = vsel %vm16, %v22, 0.0
  %24 = vadd.xlane.f32.xlu0 %v23
  %v25 = vpop.xlane.xlu0 %24
  %v26 = vlog2.pop %v25
  %v27 = vmul.f32 %v26, 0.6931472
  %v28 = vadd.f32 %v27, %v19
  %v29 = vlaneseq
  %v30 = vand.u32 %v29, 127
  %31 = vset.pattern.permute.xlu0 0
  %32 = vperm.xlu0 %31, %v15
  %v33 = vpop.permute.xlu0 %32
  %vm34 = vcmp.eq.s32.totalorder %v30, %v33
  %v35 = vsel %vm34, 1, 0
  %v36 = vcvt.s32.f32 %v35
  %v37 = vmul.f32 %v36, %v14
  %v38 = vsel %vm16, %v37, 0.0
  %39 = vadd.xlane.f32.xlu0 %v38
  %v40 = vpop.xlane.xlu0 %39
  %v41 = vld [vmem:[%s2] sm:$0x1]
  %v43 = vlaneseq
  %v44 = vshrl.u32 %v43, 7
  %v45 = vsub.s32 0, %v44
  %v46 = vrot.slane %v41, %v45
  %v48 = vmul.f32 %v36, %v46
  %v49 = vsel %vm16, %v48, 0.0
  %50 = vadd.xlane.f32.xlu0 %v49
  %v51 = vpop.xlane.xlu0 %50
  %v52 = vsub.f32 %v28, %v40
  %v53 = vmul.f32 %v51, %v52
  %v54 = vsub.f32 0.0, %v53
  %v55 = vmul.f32 %v54, 1.442695
  %v56 = vpow.pop %v55
  %v57 = vsub.f32 1.0, %v56
  %v58 = vmul.f32 %v57, %v57
  %v59 = vmul.f32 %v58, %v53
  %v60 = vlaneseq
  %v61 = vshrl.u32 %v60, 7
  %s62 = smul.u32 0, 8
  %v63 = vstv %s62
  %v64 = vadd.s32 %v61, %v63
  %vm65 = vcmp.lt.s32.totalorder %v64, 8
  %v66 = vsel %vm65, %v59, 0.0
  %vm67 = vcmask 7168
  %v68 = vsel %vm67, %v66, 0.0
  %69 = vadd.xlane.f32.xlu0 %v68
  %v70 = vpop.xlane.xlu0 %69
  %v71 = vrot.slane %v70, 4
  %v72 = vadd.f32 %v70, %v71
  %v73 = vrot.slane %v72, 2
  %v74 = vadd.f32 %v72, %v73
  %v75 = vrot.slane %v74, 1
  %v76 = vadd.f32 %v74, %v75
  %s77 = vtos %v76
  %v78 = vstv %s77
  %79 = vst [vmem:[%s3] sm:$0xff] %v78
  // Predicated region
  $region14: #{weighted_focal_loss.1} parent=0 // pred_check
    _
  $region15: #{weighted_focal_loss.1} parent=0 // pred_check_branch
    %81 = sbr.rel (0) target = $region17
  $region16: #{weighted_focal_loss.1} parent=0 // pred_region
    _
  $region17: #{weighted_focal_loss.1} parent=0 // pred_fallthru
    _
  // Predicated region
  $region18: #{weighted_focal_loss.1} parent=0 // pred_check
    _
  $region19: #{weighted_focal_loss.1} parent=0 // pred_check_branch
    %83 = sbr.rel (0) target = $region21
  $region20: #{weighted_focal_loss.1} parent=0 // pred_region
    _
  $region21: #{weighted_focal_loss.1} parent=0 // pred_fallthru
    _

</llo_original>
